<compile_context>
chip_gen: v7x
topology: tpu7x:2x2x1
jax: 0.10.0
libtpu: 0.0.40
codegen_flags: <defaults>
</compile_context>

<pallas_src>
import math
from functools import partial

import jax
import jax.numpy as jnp
from jax import lax
from jax.experimental import pallas as pl
from jax.experimental.pallas import tpu as pltpu


# ----------------------------------------------------------------------------
# Helpers
# ----------------------------------------------------------------------------
def _largest_divisor_leq(n, cap):
    cap = max(1, min(n, cap))
    for t in range(cap, 0, -1):
        if n % t == 0:
            return t
    return 1


def _pick_head_group(n_head, head_dim, max_cols=768):
    """Largest divisor g of n_head with g*3*head_dim <= max_cols (MXU fill)."""
    g = 1
    for cand in range(1, n_head + 1):
        if n_head % cand == 0 and cand * 3 * head_dim <= max_cols:
            g = cand
    return g


def _vmem_limit_bytes(default=48 * 1024 * 1024):
    """Per-generation scoped-VMEM ceiling (3/4 of physical; 48 MiB fallback)."""
    try:
        info = pltpu.get_tpu_info()
        cap = getattr(info, "vmem_capacity_bytes", None)
        if cap:
            return int(cap) * 3 // 4
    except Exception:
        pass
    return default


# ----------------------------------------------------------------------------
# Kernel 1: fused, head-grouped QKV projection.  grid = (G, B, nT)
#   x (1, tT, C) @ W_grp (C, g*3D) + b -> per-head q/k/v slices of (B,H,T,D)
# Head-group axis is OUTERMOST so the weight slab is DMA'd once per group.
# ----------------------------------------------------------------------------
def _qkv_proj_kernel(x_ref, w_ref, b_ref, q_ref, k_ref, v_ref, *, g, head_dim):
    x = x_ref[0]                                                    # (tT, C)
    y = jnp.dot(x, w_ref[0], preferred_element_type=jnp.float32)   # (tT, g*3D)
    y = y + b_ref[0]
    for hg in range(g):                         # static unroll over group heads
        base = hg * 3 * head_dim
        q_ref[0, hg] = y[:, base:base + head_dim].astype(q_ref.dtype)
        k_ref[0, hg] = y[:, base + head_dim:base + 2 * head_dim].astype(k_ref.dtype)
        v_ref[0, hg] = y[:, base + 2 * head_dim:base + 3 * head_dim].astype(v_ref.dtype)


# ----------------------------------------------------------------------------
# Kernel 2: flash attention with online softmax.  grid = (B, H, nq, nkv)
# Output block is resident across the kv axis (accumulator pattern).
# Requires tq == tkv (interior / diagonal split + clamped K/V index maps).
# ----------------------------------------------------------------------------
def _flash_attn_kernel(q_ref, k_ref, v_ref, o_ref, m_sc, l_sc, acc_sc, *,
                       tq, tkv):
    qi = pl.program_id(2)
    ki = pl.program_id(3)
    nk = pl.num_programs(3)

    @pl.when(ki == 0)
    def _():
        m_sc[...] = jnp.full(m_sc.shape, -jnp.inf, dtype=jnp.float32)
        l_sc[...] = jnp.zeros(l_sc.shape, dtype=jnp.float32)
        acc_sc[...] = jnp.zeros(acc_sc.shape, dtype=jnp.float32)

    def step(masked):
        q = q_ref[0, 0]                 # (tq, D) -- 1/sqrt(D) folded into W_q
        k = k_ref[0, 0]                 # (tkv, D)
        v = v_ref[0, 0]                 # (tkv, D)

        # QK^T: contract head dim of both operands (no transpose/relayout).
        s = lax.dot_general(q, k, (((1,), (1,)), ((), ())),
                            preferred_element_type=jnp.float32)     # (tq, tkv)

        if masked:
            # Diagonal block: relative indices suffice since tq == tkv and the
            # q/k tile starts coincide when ki == qi.
            row = lax.broadcasted_iota(jnp.int32, (tq, tkv), 0)
            col = lax.broadcasted_iota(jnp.int32, (tq, tkv), 1)
            s = jnp.where(col <= row, s, jnp.float32(-1e30))

        # Online softmax update (all statistics in f32).
        m_prev = m_sc[...]
        m_new = jnp.maximum(m_prev, jnp.max(s, axis=-1, keepdims=True))
        alpha = jnp.exp(m_prev - m_new)
        p = jnp.exp(s - m_new)
        l_sc[...] = alpha * l_sc[...] + jnp.sum(p, axis=-1, keepdims=True)
        acc_sc[...] = alpha * acc_sc[...] + jnp.dot(
            p.astype(v.dtype), v, preferred_element_type=jnp.float32)
        m_sc[...] = m_new

    # Interior block (fully visible): no element mask / iota / where at all.
    @pl.when(ki < qi)
    def _():
        step(masked=False)

    # Diagonal-straddling block: causal element mask.
    # (ki > qi blocks are fully masked: zero compute, and their K/V DMA is
    #  elided by the clamped index maps in the wrapper.)
    @pl.when(ki == qi)
    def _():
        step(masked=True)

    @pl.when(ki == nk - 1)
    def _():
        inv_l = pl.reciprocal(l_sc[...], approx=True)   # EUP, nearly free
        o_ref[0, 0] = (acc_sc[...] * inv_l).astype(o_ref.dtype)


# ----------------------------------------------------------------------------
# Kernel 3: output projection, reducing g heads per step.  grid = (B, nT, G)
#   out[b, t_tile] = bias + sum_grp sum_{hg<g} y[b, grp*g+hg] (tT,D) @ W_h (D,C)
# Head-group axis is the (last, "arbitrary") reduction axis; f32 acc in VMEM,
# a single acc += per grid step (g-fold less accumulator RMW traffic).
# ----------------------------------------------------------------------------
def _out_proj_kernel(y_ref, w_ref, b_ref, o_ref, acc_ref, *, g):
    grp = pl.program_id(2)

    @pl.when(grp == 0)
    def _():
        acc_ref[...] = jnp.broadcast_to(b_ref[...].astype(jnp.float32),
                                        acc_ref.shape)

    contrib = jnp.dot(y_ref[0, 0], w_ref[0, 0],
                      preferred_element_type=jnp.float32)
    for hg in range(1, g):
        contrib = contrib + jnp.dot(y_ref[0, hg], w_ref[0, hg],
                                    preferred_element_type=jnp.float32)
    acc_ref[...] += contrib

    @pl.when(grp == pl.num_programs(2) - 1)
    def _():
        o_ref[0] = acc_ref[...].astype(o_ref.dtype)


# ----------------------------------------------------------------------------
# Wrapper
# ----------------------------------------------------------------------------
def causal_self_attention(x, w_attn, b_attn, w_proj, b_proj, n_head, *,
                          compute_dtype=jnp.bfloat16):
    """x: (B, T, C); w_attn: (3C, C), w_proj: (C, C) in torch (out, in) layout."""
    B, T, C = x.shape
    assert C % n_head == 0
    D = C // n_head
    out_dtype = x.dtype
    scale = 1.0 / math.sqrt(D)

    g = _pick_head_group(n_head, D)        # heads per group
    G = n_head // g
    tT = _largest_divisor_leq(T, 256)      # seq tile for projection kernels
    tq = _largest_divisor_leq(T, 256)      # flash q tile
    tkv = tq                               # must equal tq (diag/clamp logic)
    nT = T // tT
    nq, nkv = T // tq, T // tkv
    vmem_limit = _vmem_limit_bytes()

    # ---- one-off parameter layout plumbing (outside the kernels) -----------
    wq, wk, wv = w_attn[:C], w_attn[C:2 * C], w_attn[2 * C:]
    bq, bk, bv = b_attn[:C], b_attn[C:2 * C], b_attn[2 * C:]
    wq = wq * scale                      # fold 1/sqrt(D) into the Q projection
    bq = bq * scale

    def head_major(w):                   # (C_out, C_in) -> (H, C_in, D)
        return jnp.transpose(w.reshape(n_head, D, C), (0, 2, 1))

    # Fused per-head [q | k | v] columns, then grouped g heads per slab.
    w_cat = jnp.concatenate([head_major(wq), head_major(wk), head_major(wv)],
                            axis=-1)                                # (H, C, 3D)
    w_grp = (w_cat.reshape(G, g, C, 3 * D).transpose(0, 2, 1, 3)
             .reshape(G, C, g * 3 * D).astype(compute_dtype))       # (G, C, g*3D)
    b_cat = jnp.concatenate([bq.reshape(n_head, 1, D),
                             bk.reshape(n_head, 1, D),
                             bv.reshape(n_head, 1, D)], axis=-1)    # (H, 1, 3D)
    b_grp = (b_cat.reshape(G, g, 1, 3 * D).transpose(0, 2, 1, 3)
             .reshape(G, 1, g * 3 * D).astype(jnp.float32))         # (G, 1, g*3D)

    # Output projection: W^T (C_in, C_out) split per head along contraction.
    wproj_grp = (jnp.transpose(w_proj).reshape(G, g, D, C)
                 .astype(compute_dtype))                            # (G, g, D, C)
    bproj2 = b_proj.reshape(1, C).astype(jnp.float32)

    xc = x.astype(compute_dtype)

    # ---- 1) fused QKV projection, head-major outputs ------------------------
    qkv_out_spec = pl.BlockSpec((1, g, tT, D), lambda grp, b, t: (b, grp, t, 0))
    q, k, v = pl.pallas_call(
        partial(_qkv_proj_kernel, g=g, head_dim=D),
        out_shape=tuple(jax.ShapeDtypeStruct((B, n_head, T, D), compute_dtype)
                        for _ in range(3)),
        grid_spec=pltpu.PrefetchScalarGridSpec(
            num_scalar_prefetch=0,
            grid=(G, B, nT),          # group outermost: weight slab DMA'd once
            in_specs=[
                pl.BlockSpec((1, tT, C), lambda grp, b, t: (b, t, 0)),        # x
                pl.BlockSpec((1, C, g * 3 * D), lambda grp, b, t: (grp, 0, 0)),  # W
                pl.BlockSpec((1, 1, g * 3 * D), lambda grp, b, t: (grp, 0, 0)),  # b
            ],
            out_specs=(qkv_out_spec, qkv_out_spec, qkv_out_spec),
        ),
        compiler_params=pltpu.CompilerParams(
            dimension_semantics=("parallel", "parallel", "parallel"),
            vmem_limit_bytes=vmem_limit),
    )(xc, w_grp, b_grp)

    # ---- 2) flash attention --------------------------------------------------
    # Clamp K/V block index to the last causally-visible block: fully-masked
    # (ki > qi) steps reuse block qi, so no DMA is issued for them.
    kv_spec = pl.BlockSpec((1, 1, tkv, D),
                           lambda b, h, qi, ki: (b, h, jnp.minimum(ki, qi), 0))
    y = pl.pallas_call(
        partial(_flash_attn_kernel, tq=tq, tkv=tkv),
        out_shape=jax.ShapeDtypeStruct((B, n_head, T, D), compute_dtype),
        grid_spec=pltpu.PrefetchScalarGridSpec(
            num_scalar_prefetch=0,
            grid=(B, n_head, nq, nkv),
            in_specs=[
                pl.BlockSpec((1, 1, tq, D), lambda b, h, qi, ki: (b, h, qi, 0)),
                kv_spec,   # k
                kv_spec,   # v
            ],
            out_specs=pl.BlockSpec((1, 1, tq, D),
                                   lambda b, h, qi, ki: (b, h, qi, 0)),
            scratch_shapes=[pltpu.VMEM((tq, 1), jnp.float32),    # m
                            pltpu.VMEM((tq, 1), jnp.float32),    # l
                            pltpu.VMEM((tq, D), jnp.float32)],   # acc
        ),
        compiler_params=pltpu.CompilerParams(
            dimension_semantics=("parallel", "parallel", "parallel",
                                 "arbitrary"),
            vmem_limit_bytes=vmem_limit),
    )(q, k, v)

    # ---- 3) output projection (reduce over head groups) ----------------------
    out = pl.pallas_call(
        partial(_out_proj_kernel, g=g),
        out_shape=jax.ShapeDtypeStruct((B, T, C), out_dtype),
        grid_spec=pltpu.PrefetchScalarGridSpec(
            num_scalar_prefetch=0,
            grid=(B, nT, G),          # head-group reduction innermost
            in_specs=[
                pl.BlockSpec((1, g, tT, D), lambda b, t, grp: (b, grp, t, 0)),  # y
                pl.BlockSpec((1, g, D, C), lambda b, t, grp: (grp, 0, 0, 0)),   # W
                pl.BlockSpec((1, C), lambda b, t, grp: (0, 0)),                 # bias
            ],
            out_specs=pl.BlockSpec((1, tT, C), lambda b, t, grp: (b, t, 0)),
            scratch_shapes=[pltpu.VMEM((tT, C), jnp.float32)],
        ),
        compiler_params=pltpu.CompilerParams(
            dimension_semantics=("parallel", "parallel", "arbitrary"),
            vmem_limit_bytes=vmem_limit),
    )(y, wproj_grp, bproj2)

    return out


# ----------------------------------------------------------------------------
# Pure-JAX reference (mirrors the PyTorch module in eval mode)
# ----------------------------------------------------------------------------
def _reference(x, w_attn, b_attn, w_proj, b_proj, n_head):
    B, T, C = x.shape
    D = C // n_head
    qkv = x @ w_attn.T + b_attn
    q, k, v = jnp.split(qkv, 3, axis=-1)
    q = q.reshape(B, T, n_head, D).transpose(0, 2, 1, 3)
    k = k.reshape(B, T, n_head, D).transpose(0, 2, 1, 3)
    v = v.reshape(B, T, n_head, D).transpose(0, 2, 1, 3)
    att = jnp.einsum('bhtd,bhsd->bhts', q, k) / math.sqrt(D)
    mask = jnp.tril(jnp.ones((T, T), dtype=bool))
    att = jnp.where(mask[None, None], att, -jnp.inf)
    att = jax.nn.softmax(att, axis=-1)
    y = jnp.einsum('bhts,bhsd->bhtd', att, v)
    y = y.transpose(0, 2, 1, 3).reshape(B, T, C)
    return y @ w_proj.T + b_proj


if __name__ == "__main__":
    # config: hidden_dim=32, num_heads=4, max_length=8, dropout=0.0
    B, T, C, H = 2, 8, 32, 4

    key = jax.random.PRNGKey(0)
    kx, kw1, kb1, kw2, kb2 = jax.random.split(key, 5)

    x = jax.random.normal(kx, (B, T, C), dtype=jnp.float32)

    # nn.Linear parameter shapes: weight (out, in), bias (out,)
    lim = 1.0 / math.sqrt(C)
    w_attn = jax.random.uniform(kw1, (3 * C, C), minval=-lim, maxval=lim,
                                dtype=jnp.float32)
    b_attn = jax.random.uniform(kb1, (3 * C,), minval=-lim, maxval=lim,
                                dtype=jnp.float32)
    w_proj = jax.random.uniform(kw2, (C, C), minval=-lim, maxval=lim,
                                dtype=jnp.float32)
    b_proj = jax.random.uniform(kb2, (C,), minval=-lim, maxval=lim,
                                dtype=jnp.float32)

    ref = _reference(x, w_attn, b_attn, w_proj, b_proj, H)

    # f32-operand path (tight check; only reassociation + approx-rcp error)
    out_f32 = causal_self_attention(x, w_attn, b_attn, w_proj, b_proj, H,
                                    compute_dtype=jnp.float32)
    out_f32 = jax.block_until_ready(out_f32)
    assert out_f32.shape == (B, T, C)
    assert jnp.allclose(out_f32, ref, atol=5e-3, rtol=5e-3), "f32 mismatch"

    # bf16 MXU operands with f32 accumulation (production default; looser tol)
    out_bf16 = causal_self_attention(x, w_attn, b_attn, w_proj, b_proj, H,
                                     compute_dtype=jnp.bfloat16)
    out_bf16 = jax.block_until_ready(out_bf16)
    assert out_bf16.shape == (B, T, C)
    assert jnp.allclose(out_bf16.astype(jnp.float32), ref,
                        atol=5e-2, rtol=5e-2), "bf16 mismatch"

    print("KERNEL_OK")
</pallas_src>

<mosaic_0001>
module attributes {stable_mosaic.version = 11 : i64} {
  func.func @_qkv_proj_kernel(%arg0: i32, %arg1: i32, %arg2: i32, %arg3: memref<1x8x32xf32, #tpu.memory_space<vmem>>, %arg4: memref<1x32x96xf32, #tpu.memory_space<vmem>>, %arg5: memref<1x1x96xf32, #tpu.memory_space<vmem>>, %arg6: memref<1x4x8x8xf32, #tpu.memory_space<vmem>>, %arg7: memref<1x4x8x8xf32, #tpu.memory_space<vmem>>, %arg8: memref<1x4x8x8xf32, #tpu.memory_space<vmem>>) attributes {dimension_semantics = [#tpu.dimension_semantics<parallel>, #tpu.dimension_semantics<parallel>, #tpu.dimension_semantics<parallel>], iteration_bounds = array<i64: 1, 2, 1>, scalar_prefetch = 0 : i64, scratch_operands = 0 : i64, tpu.core_type = #tpu.core_type<tc>, window_params = [{transform_indices = @transform_0, window_bounds = array<i64: 1, 8, 32>}, {transform_indices = @transform_1, window_bounds = array<i64: 1, 32, 96>}, {transform_indices = @transform_2, window_bounds = array<i64: 1, 1, 96>}, {transform_indices = @transform_3, window_bounds = array<i64: 1, 4, 8, 8>}, {transform_indices = @transform_4, window_bounds = array<i64: 1, 4, 8, 8>}, {transform_indices = @transform_5, window_bounds = array<i64: 1, 4, 8, 8>}]} {
    %c0 = arith.constant 0 : index
    %c0_0 = arith.constant 0 : index
    %c0_1 = arith.constant 0 : index
    %0 = vector.load %arg3[%c0, %c0_0, %c0_1] : memref<1x8x32xf32, #tpu.memory_space<vmem>>, vector<1x8x32xf32>
    %1 = vector.shape_cast %0 : vector<1x8x32xf32> to vector<8x32xf32>
    %c0_2 = arith.constant 0 : index
    %c0_3 = arith.constant 0 : index
    %c0_4 = arith.constant 0 : index
    %2 = vector.load %arg4[%c0_2, %c0_3, %c0_4] : memref<1x32x96xf32, #tpu.memory_space<vmem>>, vector<1x32x96xf32>
    %3 = vector.shape_cast %2 : vector<1x32x96xf32> to vector<32x96xf32>
    %cst = arith.constant dense<0.000000e+00> : vector<8x96xf32>
    %4 = tpu.matmul %1, %3, %cst {dimension_numbers = #tpu.dot_dimension_numbers<[1], [0], [0], [1], [0, 0, 1, 1], [], []>} : vector<8x32xf32>, vector<32x96xf32>, vector<8x96xf32> -> vector<8x96xf32>
    %c0_5 = arith.constant 0 : index
    %c0_6 = arith.constant 0 : index
    %c0_7 = arith.constant 0 : index
    %5 = vector.load %arg5[%c0_5, %c0_6, %c0_7] : memref<1x1x96xf32, #tpu.memory_space<vmem>>, vector<1x1x96xf32>
    %6 = vector.shape_cast %5 : vector<1x1x96xf32> to vector<1x96xf32>
    %7 = vector.broadcast %6 : vector<1x96xf32> to vector<8x96xf32>
    %8 = arith.addf %4, %7 : vector<8x96xf32>
    %9 = vector.extract_strided_slice %8 {offsets = [0, 0], sizes = [8, 8], strides = [1, 1]} : vector<8x96xf32> to vector<8x8xf32>
    %c0_8 = arith.constant 0 : index
    %c0_9 = arith.constant 0 : index
    %c0_10 = arith.constant 0 : index
    %c0_11 = arith.constant 0 : index
    %10 = vector.load %arg6[%c0_8, %c0_9, %c0_10, %c0_11] : memref<1x4x8x8xf32, #tpu.memory_space<vmem>>, vector<1x1x8x8xf32>
    %11 = vector.shape_cast %10 : vector<1x1x8x8xf32> to vector<8x8xf32>
    %12 = vector.shape_cast %9 : vector<8x8xf32> to vector<1x1x8x8xf32>
    tpu.vector_store %arg6[%c0_8, %c0_9, %c0_10, %c0_11], %12 {strides = array<i32>} : memref<1x4x8x8xf32, #tpu.memory_space<vmem>>, vector<1x1x8x8xf32>,
    %13 = vector.extract_strided_slice %8 {offsets = [0, 8], sizes = [8, 8], strides = [1, 1]} : vector<8x96xf32> to vector<8x8xf32>
    %c0_12 = arith.constant 0 : index
    %c0_13 = arith.constant 0 : index
    %c0_14 = arith.constant 0 : index
    %c0_15 = arith.constant 0 : index
    %14 = vector.load %arg7[%c0_12, %c0_13, %c0_14, %c0_15] : memref<1x4x8x8xf32, #tpu.memory_space<vmem>>, vector<1x1x8x8xf32>
    %15 = vector.shape_cast %14 : vector<1x1x8x8xf32> to vector<8x8xf32>
    %16 = vector.shape_cast %13 : vector<8x8xf32> to vector<1x1x8x8xf32>
    tpu.vector_store %arg7[%c0_12, %c0_13, %c0_14, %c0_15], %16 {strides = array<i32>} : memref<1x4x8x8xf32, #tpu.memory_space<vmem>>, vector<1x1x8x8xf32>,
    %17 = vector.extract_strided_slice %8 {offsets = [0, 16], sizes = [8, 8], strides = [1, 1]} : vector<8x96xf32> to vector<8x8xf32>
    %c0_16 = arith.constant 0 : index
    %c0_17 = arith.constant 0 : index
    %c0_18 = arith.constant 0 : index
    %c0_19 = arith.constant 0 : index
    %18 = vector.load %arg8[%c0_16, %c0_17, %c0_18, %c0_19] : memref<1x4x8x8xf32, #tpu.memory_space<vmem>>, vector<1x1x8x8xf32>
    %19 = vector.shape_cast %18 : vector<1x1x8x8xf32> to vector<8x8xf32>
    %20 = vector.shape_cast %17 : vector<8x8xf32> to vector<1x1x8x8xf32>
    tpu.vector_store %arg8[%c0_16, %c0_17, %c0_18, %c0_19], %20 {strides = array<i32>} : memref<1x4x8x8xf32, #tpu.memory_space<vmem>>, vector<1x1x8x8xf32>,
    %21 = vector.extract_strided_slice %8 {offsets = [0, 24], sizes = [8, 8], strides = [1, 1]} : vector<8x96xf32> to vector<8x8xf32>
    %c0_20 = arith.constant 0 : index
    %c1 = arith.constant 1 : index
    %c0_21 = arith.constant 0 : index
    %c0_22 = arith.constant 0 : index
    %22 = vector.load %arg6[%c0_20, %c1, %c0_21, %c0_22] : memref<1x4x8x8xf32, #tpu.memory_space<vmem>>, vector<1x1x8x8xf32>
    %23 = vector.shape_cast %22 : vector<1x1x8x8xf32> to vector<8x8xf32>
    %24 = vector.shape_cast %21 : vector<8x8xf32> to vector<1x1x8x8xf32>
    tpu.vector_store %arg6[%c0_20, %c1, %c0_21, %c0_22], %24 {strides = array<i32>} : memref<1x4x8x8xf32, #tpu.memory_space<vmem>>, vector<1x1x8x8xf32>,
    %25 = vector.extract_strided_slice %8 {offsets = [0, 32], sizes = [8, 8], strides = [1, 1]} : vector<8x96xf32> to vector<8x8xf32>
    %c0_23 = arith.constant 0 : index
    %c1_24 = arith.constant 1 : index
    %c0_25 = arith.constant 0 : index
    %c0_26 = arith.constant 0 : index
    %26 = vector.load %arg7[%c0_23, %c1_24, %c0_25, %c0_26] : memref<1x4x8x8xf32, #tpu.memory_space<vmem>>, vector<1x1x8x8xf32>
    %27 = vector.shape_cast %26 : vector<1x1x8x8xf32> to vector<8x8xf32>
    %28 = vector.shape_cast %25 : vector<8x8xf32> to vector<1x1x8x8xf32>
    tpu.vector_store %arg7[%c0_23, %c1_24, %c0_25, %c0_26], %28 {strides = array<i32>} : memref<1x4x8x8xf32, #tpu.memory_space<vmem>>, vector<1x1x8x8xf32>,
    %29 = vector.extract_strided_slice %8 {offsets = [0, 40], sizes = [8, 8], strides = [1, 1]} : vector<8x96xf32> to vector<8x8xf32>
    %c0_27 = arith.constant 0 : index
    %c1_28 = arith.constant 1 : index
    %c0_29 = arith.constant 0 : index
    %c0_30 = arith.constant 0 : index
    %30 = vector.load %arg8[%c0_27, %c1_28, %c0_29, %c0_30] : memref<1x4x8x8xf32, #tpu.memory_space<vmem>>, vector<1x1x8x8xf32>
    %31 = vector.shape_cast %30 : vector<1x1x8x8xf32> to vector<8x8xf32>
    %32 = vector.shape_cast %29 : vector<8x8xf32> to vector<1x1x8x8xf32>
    tpu.vector_store %arg8[%c0_27, %c1_28, %c0_29, %c0_30], %32 {strides = array<i32>} : memref<1x4x8x8xf32, #tpu.memory_space<vmem>>, vector<1x1x8x8xf32>,
    %33 = vector.extract_strided_slice %8 {offsets = [0, 48], sizes = [8, 8], strides = [1, 1]} : vector<8x96xf32> to vector<8x8xf32>
    %c0_31 = arith.constant 0 : index
    %c2 = arith.constant 2 : index
    %c0_32 = arith.constant 0 : index
    %c0_33 = arith.constant 0 : index
    %34 = vector.load %arg6[%c0_31, %c2, %c0_32, %c0_33] : memref<1x4x8x8xf32, #tpu.memory_space<vmem>>, vector<1x1x8x8xf32>
    %35 = vector.shape_cast %34 : vector<1x1x8x8xf32> to vector<8x8xf32>
    %36 = vector.shape_cast %33 : vector<8x8xf32> to vector<1x1x8x8xf32>
    tpu.vector_store %arg6[%c0_31, %c2, %c0_32, %c0_33], %36 {strides = array<i32>} : memref<1x4x8x8xf32, #tpu.memory_space<vmem>>, vector<1x1x8x8xf32>,
    %37 = vector.extract_strided_slice %8 {offsets = [0, 56], sizes = [8, 8], strides = [1, 1]} : vector<8x96xf32> to vector<8x8xf32>
    %c0_34 = arith.constant 0 : index
    %c2_35 = arith.constant 2 : index
    %c0_36 = arith.constant 0 : index
    %c0_37 = arith.constant 0 : index
    %38 = vector.load %arg7[%c0_34, %c2_35, %c0_36, %c0_37] : memref<1x4x8x8xf32, #tpu.memory_space<vmem>>, vector<1x1x8x8xf32>
    %39 = vector.shape_cast %38 : vector<1x1x8x8xf32> to vector<8x8xf32>
    %40 = vector.shape_cast %37 : vector<8x8xf32> to vector<1x1x8x8xf32>
    tpu.vector_store %arg7[%c0_34, %c2_35, %c0_36, %c0_37], %40 {strides = array<i32>} : memref<1x4x8x8xf32, #tpu.memory_space<vmem>>, vector<1x1x8x8xf32>,
    %41 = vector.extract_strided_slice %8 {offsets = [0, 64], sizes = [8, 8], strides = [1, 1]} : vector<8x96xf32> to vector<8x8xf32>
    %c0_38 = arith.constant 0 : index
    %c2_39 = arith.constant 2 : index
    %c0_40 = arith.constant 0 : index
    %c0_41 = arith.constant 0 : index
    %42 = vector.load %arg8[%c0_38, %c2_39, %c0_40, %c0_41] : memref<1x4x8x8xf32, #tpu.memory_space<vmem>>, vector<1x1x8x8xf32>
    %43 = vector.shape_cast %42 : vector<1x1x8x8xf32> to vector<8x8xf32>
    %44 = vector.shape_cast %41 : vector<8x8xf32> to vector<1x1x8x8xf32>
    tpu.vector_store %arg8[%c0_38, %c2_39, %c0_40, %c0_41], %44 {strides = array<i32>} : memref<1x4x8x8xf32, #tpu.memory_space<vmem>>, vector<1x1x8x8xf32>,
    %45 = vector.extract_strided_slice %8 {offsets = [0, 72], sizes = [8, 8], strides = [1, 1]} : vector<8x96xf32> to vector<8x8xf32>
    %c0_42 = arith.constant 0 : index
    %c3 = arith.constant 3 : index
    %c0_43 = arith.constant 0 : index
    %c0_44 = arith.constant 0 : index
    %46 = vector.load %arg6[%c0_42, %c3, %c0_43, %c0_44] : memref<1x4x8x8xf32, #tpu.memory_space<vmem>>, vector<1x1x8x8xf32>
    %47 = vector.shape_cast %46 : vector<1x1x8x8xf32> to vector<8x8xf32>
    %48 = vector.shape_cast %45 : vector<8x8xf32> to vector<1x1x8x8xf32>
    tpu.vector_store %arg6[%c0_42, %c3, %c0_43, %c0_44], %48 {strides = array<i32>} : memref<1x4x8x8xf32, #tpu.memory_space<vmem>>, vector<1x1x8x8xf32>,
    %49 = vector.extract_strided_slice %8 {offsets = [0, 80], sizes = [8, 8], strides = [1, 1]} : vector<8x96xf32> to vector<8x8xf32>
    %c0_45 = arith.constant 0 : index
    %c3_46 = arith.constant 3 : index
    %c0_47 = arith.constant 0 : index
    %c0_48 = arith.constant 0 : index
    %50 = vector.load %arg7[%c0_45, %c3_46, %c0_47, %c0_48] : memref<1x4x8x8xf32, #tpu.memory_space<vmem>>, vector<1x1x8x8xf32>
    %51 = vector.shape_cast %50 : vector<1x1x8x8xf32> to vector<8x8xf32>
    %52 = vector.shape_cast %49 : vector<8x8xf32> to vector<1x1x8x8xf32>
    tpu.vector_store %arg7[%c0_45, %c3_46, %c0_47, %c0_48], %52 {strides = array<i32>} : memref<1x4x8x8xf32, #tpu.memory_space<vmem>>, vector<1x1x8x8xf32>,
    %53 = vector.extract_strided_slice %8 {offsets = [0, 88], sizes = [8, 8], strides = [1, 1]} : vector<8x96xf32> to vector<8x8xf32>
    %c0_49 = arith.constant 0 : index
    %c3_50 = arith.constant 3 : index
    %c0_51 = arith.constant 0 : index
    %c0_52 = arith.constant 0 : index
    %54 = vector.load %arg8[%c0_49, %c3_50, %c0_51, %c0_52] : memref<1x4x8x8xf32, #tpu.memory_space<vmem>>, vector<1x1x8x8xf32>
    %55 = vector.shape_cast %54 : vector<1x1x8x8xf32> to vector<8x8xf32>
    %56 = vector.shape_cast %53 : vector<8x8xf32> to vector<1x1x8x8xf32>
    tpu.vector_store %arg8[%c0_49, %c3_50, %c0_51, %c0_52], %56 {strides = array<i32>} : memref<1x4x8x8xf32, #tpu.memory_space<vmem>>, vector<1x1x8x8xf32>,
    return
  }
  func.func @transform_0(%arg0: i32, %arg1: i32, %arg2: i32) -> (i32, i32, i32) {
    %c0_i32 = arith.constant 0 : i32
    %c0_i32_0 = arith.constant 0 : i32
    return %arg1, %arg2, %c0_i32 : i32, i32, i32
  }
  func.func @transform_1(%arg0: i32, %arg1: i32, %arg2: i32) -> (i32, i32, i32) {
    %c0_i32 = arith.constant 0 : i32
    %c0_i32_0 = arith.constant 0 : i32
    %c0_i32_1 = arith.constant 0 : i32
    return %arg0, %c0_i32, %c0_i32_0 : i32, i32, i32
  }
  func.func @transform_2(%arg0: i32, %arg1: i32, %arg2: i32) -> (i32, i32, i32) {
    %c0_i32 = arith.constant 0 : i32
    %c0_i32_0 = arith.constant 0 : i32
    %c0_i32_1 = arith.constant 0 : i32
    return %arg0, %c0_i32, %c0_i32_0 : i32, i32, i32
  }
  func.func @transform_3(%arg0: i32, %arg1: i32, %arg2: i32) -> (i32, i32, i32, i32) {
    %c0_i32 = arith.constant 0 : i32
    %c0_i32_0 = arith.constant 0 : i32
    return %arg1, %arg0, %arg2, %c0_i32 : i32, i32, i32, i32
  }
  func.func @transform_4(%arg0: i32, %arg1: i32, %arg2: i32) -> (i32, i32, i32, i32) {
    %c0_i32 = arith.constant 0 : i32
    %c0_i32_0 = arith.constant 0 : i32
    return %arg1, %arg0, %arg2, %c0_i32 : i32, i32, i32, i32
  }
  func.func @transform_5(%arg0: i32, %arg1: i32, %arg2: i32) -> (i32, i32, i32, i32) {
    %c0_i32 = arith.constant 0 : i32
    %c0_i32_0 = arith.constant 0 : i32
    return %arg1, %arg0, %arg2, %c0_i32 : i32, i32, i32, i32
  }
}

</mosaic_0001>

<llo_original>
// kernel: tpu_custom_call.1
$region0: #{tpu_custom_call.1}
  #allocation0 [shape = 'u32[]', space=smem, size = 0x4, offset = 0x4, fixed_abs, tag = 'smem constant byte address 0x4 - core index']
  #allocation1 [shape = 'u32[144,128]{1,0:T(1,128)}', space=vmem, size = 0x12000, scoped, tag = 'internal scratch']
  %s0 = inlined_call_operand.hbm [shape: f32[2,8,32], index: 0, kind: input, shape index: {}]
  %s1 = inlined_call_operand.hbm [shape: f32[1,32,96], index: 1, kind: input, shape index: {}]
  %s2 = inlined_call_operand.vmem [shape: f32[1,1,96], index: 2, kind: input, shape index: {}]
  %s3 = inlined_call_operand.hbm [shape: f32[2,4,8,8], index: 3, kind: output, shape index: {0}]
  %s4 = inlined_call_operand.hbm [shape: f32[2,4,8,8], index: 4, kind: output, shape index: {1}]
  %s5 = inlined_call_operand.hbm [shape: f32[2,4,8,8], index: 5, kind: output, shape index: {2}]
  %6 = xla_tuple %s3, %s4, %s5
  %s7 = sld [smem:[#allocation0]]
  $region69: #{tpu_custom_call.1} parent=0
    _
  %s9 = ssub.s32 1, %s7
  %s10 = scalar_select 0, %s9, %s7
  $region1: #{tpu_custom_call.1} parent=0
    #allocation2 [shape = 'u8[8192]{0}', space=vmem, size = 0x2000, scoped, tag = 'input window, operand 0']
    #allocation3 [shape = 's32[2]{0}', space=sflag, size = 0x8, scoped, tag = 'scoped memory for tpu_custom_call.1']
    #allocation4 [shape = 's32[2]{0}', space=sflag, size = 0x8, scoped, tag = 'scoped memory for tpu_custom_call.1']
    #allocation5 [shape = 'u8[16384]{0}', space=vmem, size = 0x4000, scoped, tag = 'input window, operand 1, single buffered']
    #allocation6 [shape = 's32[1]{0}', space=sflag, size = 0x4, scoped, tag = 'scoped memory for tpu_custom_call.1']
    #allocation7 [shape = 'u8[32768]{0}', space=vmem, size = 0x8000, scoped, tag = 'output window, operand 0']
    #allocation8 [shape = 'u8[32768]{0}', space=vmem, size = 0x8000, scoped, tag = 'output window, operand 1']
    #allocation9 [shape = 's32[2]{0}', space=sflag, size = 0x8, scoped, tag = 'scoped memory for tpu_custom_call.1']
    #allocation10 [shape = 'u8[32768]{0}', space=vmem, size = 0x8000, scoped, tag = 'output window, operand 2']
    %11 = vsyncpa [#allocation3], 0
    %s12 = scalar_lea.sflag [#allocation3], 1
    %13 = vsyncpa %s12, 0
    %14 = vsyncpa [#allocation6], 0
    %15 = vsyncpa [#allocation4], 0
    %s16 = scalar_lea.sflag [#allocation4], 1
    %17 = vsyncpa %s16, 0
    %18 = vsyncpa [#allocation9], 0
    %s19 = scalar_lea.sflag [#allocation9], 1
    %20 = vsyncpa %s19, 0
    loop: start=0, step=1, limit=4
    $region2: #{tpu_custom_call.1} parent=1 // loop_pre_header
      _
    $region3: #{tpu_custom_call.1} parent=1 // loop_header
      %s22 = sphi 0, %s26
      %p23 = scmp.ge.s32.totalorder %s22, 4
      %s29 = sphi 0, %s48
      %s30 = sphi 0, %s44
      %s31 = sphi 0, %s40
      %s32 = sphi 0, %s29
      %s33 = sphi 0, %s30
      %s34 = sphi 0, %s31
      %s35 = sphi 0, %s32
      %s36 = sphi 0, %s33
      %s37 = sphi 0, %s34
      %s53 = sphi 0, %s55
      %s56 = sphi 0, %s53
      %s57 = sphi 0, %s56
      %s73 = sphi 0, %s57
      %s79 = sphi 0, %s81
      %s82 = sphi 0, %s79
      %s83 = sphi 0, %s82
      %s99 = sphi 0, %s83
      %s105 = sphi 0, %s107
      %s108 = sphi 0, %s105
      %s109 = sphi 0, %s108
      %s125 = sphi 0, %s109
      %s135 = sphi 0, %s137
      %s138 = sphi 0, %s135
      %s139 = sphi 0, %s138
      %s155 = sphi 0, %s139
      %s165 = sphi 0, %s167
      %s168 = sphi 0, %s165
      %s169 = sphi 0, %s168
      %s185 = sphi 0, %s169
      %s195 = sphi 0, %s197
      %s198 = sphi 0, %s195
      %s199 = sphi 0, %s198
      %s215 = sphi 0, %s199
    $region4: #{tpu_custom_call.1} parent=1 // loop_header_branch
      %25 = sbr.rel (%p23) target = $region8
    $region5: #{tpu_custom_call.1} parent=1 // loop_body
      %s27 = ssub.s32 %s22, 1
      %s28 = ssub.s32 %s22, 2
      %s38 = sadd.s32 1, %s31
      %p39 = scmp.ge.s32.totalorder %s38, 1
      %s40 = scalar_select %p39, 0, %s38
      %s41 = sadd.s32 1, %s30
      %s42 = scalar_select %p39, %s41, %s30
      %p43 = scmp.ge.s32.totalorder %s42, 2
      %s44 = scalar_select %p43, 0, %s42
      %s45 = sadd.s32 1, %s29
      %s46 = scalar_select %p43, %s45, %s29
      %p47 = scmp.ge.s32.totalorder %s46, 1
      %s48 = scalar_select %p47, 0, %s46
      %s49 = ssub.s32 %s30, %s44
      %s50 = ssub.s32 %s31, %s40
      %s51 = sor.u32 %s49, %s50
      %p52 = scmp.eq.s32.totalorder %s51, 0
      %s54 = sadd.s32 %s53, 1
      %s55 = scalar_select %p52, %s53, %s54
      %p58 = pneg %p52
      %p59 = scmp.eq.s32.totalorder %s22, 1
      %p60 = por %p58, %p59
      %p61 = scmp.ne.s32.totalorder %s53, %s56
      %p62 = scmp.eq.s32.totalorder %s22, 0
      %p63 = por %p61, %p62
      %p64 = scmp.ne.s32.totalorder %s53, %s56
      %p65 = scmp.eq.s32.totalorder %s27, 1
      %p66 = por %p64, %p65
      %p67 = scmp.ne.s32.totalorder %s56, %s57
      %p68 = scmp.eq.s32.totalorder %s27, 0
      %p69 = por %p67, %p68
      %p70 = scmp.ne.s32.totalorder %s56, %s57
      %p71 = scmp.eq.s32.totalorder %s28, 1
      %p72 = por %p70, %p71
      %p74 = scmp.ne.s32.totalorder %s57, %s73
      %p75 = scmp.eq.s32.totalorder %s28, 0
      %p76 = por %p74, %p75
      %s77 = ssub.s32 %s29, %s48
      %p78 = scmp.eq.s32.totalorder %s77, 0
      %s80 = sadd.s32 %s79, 1
      %s81 = scalar_select %p78, %s79, %s80
      %p84 = pneg %p78
      %p85 = scmp.eq.s32.totalorder %s22, 1
      %p86 = por %p84, %p85
      %p87 = scmp.ne.s32.totalorder %s79, %s82
      %p88 = scmp.eq.s32.totalorder %s22, 0
      %p89 = por %p87, %p88
      %p90 = scmp.ne.s32.totalorder %s79, %s82
      %p91 = scmp.eq.s32.totalorder %s27, 1
      %p92 = por %p90, %p91
      %p93 = scmp.ne.s32.totalorder %s82, %s83
      %p94 = scmp.eq.s32.totalorder %s27, 0
      %p95 = por %p93, %p94
      %p96 = scmp.ne.s32.totalorder %s82, %s83
      %p97 = scmp.eq.s32.totalorder %s28, 1
      %p98 = por %p96, %p97
      %p100 = scmp.ne.s32.totalorder %s83, %s99
      %p101 = scmp.eq.s32.totalorder %s28, 0
      %p102 = por %p100, %p101
      %s103 = ssub.s32 %s29, %s48
      %p104 = scmp.eq.s32.totalorder %s103, 0
      %s106 = sadd.s32 %s105, 1
      %s107 = scalar_select %p104, %s105, %s106
      %p110 = pneg %p104
      %p111 = scmp.eq.s32.totalorder %s22, 1
      %p112 = por %p110, %p111
      %p113 = scmp.ne.s32.totalorder %s105, %s108
      %p114 = scmp.eq.s32.totalorder %s22, 0
      %p115 = por %p113, %p114
      %p116 = scmp.ne.s32.totalorder %s105, %s108
      %p117 = scmp.eq.s32.totalorder %s27, 1
      %p118 = por %p116, %p117
      %p119 = scmp.ne.s32.totalorder %s108, %s109
      %p120 = scmp.eq.s32.totalorder %s27, 0
      %p121 = por %p119, %p120
      %p122 = scmp.ne.s32.totalorder %s108, %s109
      %p123 = scmp.eq.s32.totalorder %s28, 1
      %p124 = por %p122, %p123
      %p126 = scmp.ne.s32.totalorder %s109, %s125
      %p127 = scmp.eq.s32.totalorder %s28, 0
      %p128 = por %p126, %p127
      %s129 = ssub.s32 %s30, %s44
      %s130 = ssub.s32 %s29, %s48
      %s131 = sor.u32 %s129, %s130
      %s132 = ssub.s32 %s31, %s40
      %s133 = sor.u32 %s131, %s132
      %p134 = scmp.eq.s32.totalorder %s133, 0
      %s136 = sadd.s32 %s135, 1
      %s137 = scalar_select %p134, %s135, %s136
      %p140 = pneg %p134
      %p141 = scmp.eq.s32.totalorder %s22, 1
      %p142 = por %p140, %p141
      %p143 = scmp.ne.s32.totalorder %s135, %s138
      %p144 = scmp.eq.s32.totalorder %s22, 0
      %p145 = por %p143, %p144
      %p146 = scmp.ne.s32.totalorder %s135, %s138
      %p147 = scmp.eq.s32.totalorder %s27, 1
      %p148 = por %p146, %p147
      %p149 = scmp.ne.s32.totalorder %s138, %s139
      %p150 = scmp.eq.s32.totalorder %s27, 0
      %p151 = por %p149, %p150
      %p152 = scmp.ne.s32.totalorder %s138, %s139
      %p153 = scmp.eq.s32.totalorder %s28, 1
      %p154 = por %p152, %p153
      %p156 = scmp.ne.s32.totalorder %s139, %s155
      %p157 = scmp.eq.s32.totalorder %s28, 0
      %p158 = por %p156, %p157
      %s159 = ssub.s32 %s30, %s44
      %s160 = ssub.s32 %s29, %s48
      %s161 = sor.u32 %s159, %s160
      %s162 = ssub.s32 %s31, %s40
      %s163 = sor.u32 %s161, %s162
      %p164 = scmp.eq.s32.totalorder %s163, 0
      %s166 = sadd.s32 %s165, 1
      %s167 = scalar_select %p164, %s165, %s166
      %p170 = pneg %p164
      %p171 = scmp.eq.s32.totalorder %s22, 1
      %p172 = por %p170, %p171
      %p173 = scmp.ne.s32.totalorder %s165, %s168
      %p174 = scmp.eq.s32.totalorder %s22, 0
      %p175 = por %p173, %p174
      %p176 = scmp.ne.s32.totalorder %s165, %s168
      %p177 = scmp.eq.s32.totalorder %s27, 1
      %p178 = por %p176, %p177
      %p179 = scmp.ne.s32.totalorder %s168, %s169
      %p180 = scmp.eq.s32.totalorder %s27, 0
      %p181 = por %p179, %p180
      %p182 = scmp.ne.s32.totalorder %s168, %s169
      %p183 = scmp.eq.s32.totalorder %s28, 1
      %p184 = por %p182, %p183
      %p186 = scmp.ne.s32.totalorder %s169, %s185
      %p187 = scmp.eq.s32.totalorder %s28, 0
      %p188 = por %p186, %p187
      %s189 = ssub.s32 %s30, %s44
      %s190 = ssub.s32 %s29, %s48
      %s191 = sor.u32 %s189, %s190
      %s192 = ssub.s32 %s31, %s40
      %s193 = sor.u32 %s191, %s192
      %p194 = scmp.eq.s32.totalorder %s193, 0
      %s196 = sadd.s32 %s195, 1
      %s197 = scalar_select %p194, %s195, %s196
      %p200 = pneg %p194
      %p201 = scmp.eq.s32.totalorder %s22, 1
      %p202 = por %p200, %p201
      %p203 = scmp.ne.s32.totalorder %s195, %s198
      %p204 = scmp.eq.s32.totalorder %s22, 0
      %p205 = por %p203, %p204
      %p206 = scmp.ne.s32.totalorder %s195, %s198
      %p207 = scmp.eq.s32.totalorder %s27, 1
      %p208 = por %p206, %p207
      %p209 = scmp.ne.s32.totalorder %s198, %s199
      %p210 = scmp.eq.s32.totalorder %s27, 0
      %p211 = por %p209, %p210
      %p212 = scmp.ne.s32.totalorder %s198, %s199
      %p213 = scmp.eq.s32.totalorder %s28, 1
      %p214 = por %p212, %p213
      %p216 = scmp.ne.s32.totalorder %s199, %s215
      %p217 = scmp.eq.s32.totalorder %s28, 0
      %p218 = por %p216, %p217
      %p219 = scmp.le.s32.totalorder 1, %s22
      %p220 = scmp.lt.s32.totalorder %s22, 3
      %p221 = pnand %p219, %p220
      %p222 = pneg %p221
      // Predicated region
      $region9: #{tpu_custom_call.1} parent=5 // pred_check
        _
      $region10: #{tpu_custom_call.1} parent=5 // pred_check_branch
        %224 = sbr.rel (%p221) target = $region12
      $region11: #{tpu_custom_call.1} parent=5 // pred_region
        %s225 = ssub.s32 %s22, 1
        // Predicated region
        $region13: #{tpu_custom_call.1} parent=11 // pred_check
          %p226 = pneg %p95
        $region14: #{tpu_custom_call.1} parent=11 // pred_check_branch
          %228 = sbr.rel (%p226) target = $region16
        $region15: #{tpu_custom_call.1} parent=11 // pred_region
          %s230 = ssub.s32 512, 512
          %231 = vsyncadd [#allocation6], %s230
          %s232 = smul.addr %s32, 4
          %s233 = smul.addr %s232, 128
          %s234 = scalar_lea.hbm %s1, %s233
          %s235 = sshll.u32 [#allocation5], 4
          %s236 = int_to_ptr.vmem [resolvable:$true] %s235
          %241 = dma.hbm_to_vmem [thread:$0]  %s234, 512, %s236, [#allocation6], 128, 128, 8
        $region16: #{tpu_custom_call.1} parent=11 // pred_fallthru
          _
        // Predicated region
        $region17: #{tpu_custom_call.1} parent=11 // pred_check
          %p242 = pneg %p121
        $region18: #{tpu_custom_call.1} parent=11 // pred_check_branch
          %244 = sbr.rel (%p242) target = $region20
        $region19: #{tpu_custom_call.1} parent=11 // pred_region
          %p245 = scmp.lt.s32.totalorder %s32, 0
          %s246 = scalar_select %p245, %s32, 0
          %s247 = scalar_lea.vmem %s2, %s246
        $region20: #{tpu_custom_call.1} parent=11 // pred_fallthru
          _
      $region12: #{tpu_custom_call.1} parent=5 // pred_fallthru
        _
      %p248 = scmp.lt.s32.totalorder %s22, 2
      // Predicated region
      $region21: #{tpu_custom_call.1} parent=5 // pred_check
        %p249 = pneg %p248
      $region22: #{tpu_custom_call.1} parent=5 // pred_check_branch
        %251 = sbr.rel (%p249) target = $region24
      $region23: #{tpu_custom_call.1} parent=5 // pred_region
        // Predicated region
        $region25: #{tpu_custom_call.1} parent=23 // pred_check
          %p252 = pneg %p63
        $region26: #{tpu_custom_call.1} parent=23 // pred_check_branch
          %254 = sbr.rel (%p252) target = $region28
        $region27: #{tpu_custom_call.1} parent=23 // pred_region
          %s255 = sand.u32 %s53, 1
          %s256 = scalar_lea.sflag [#allocation3], %s255
          %s257 = sand.u32 %s53, 1
          %s258 = smul.addr %s257, 8
          %s259 = scalar_lea.vmem [#allocation2], %s258
          %s261 = ssub.s32 128, 128
          %262 = vsyncadd %s256, %s261
          %s263 = sadd.s32 %s31, %s30
          %s264 = smul.addr %s263, 128
          %s265 = scalar_lea.hbm %s0, %s264
          %s267 = sshll.u32 %s259, 4
          %s268 = int_to_ptr.vmem [resolvable:$true] %s267
          %270 = dma.hbm_to_vmem [thread:$0]  %s265, 128, %s268, %s256
        $region28: #{tpu_custom_call.1} parent=23 // pred_fallthru
          _
      $region24: #{tpu_custom_call.1} parent=5 // pred_fallthru
        _
      %p271 = scmp.le.s32.totalorder 1, %s22
      %p272 = scmp.lt.s32.totalorder %s22, 3
      %p273 = pnand %p271, %p272
      %p274 = pneg %p273
      // Predicated region
      $region29: #{tpu_custom_call.1} parent=5 // pred_check
        _
      $region30: #{tpu_custom_call.1} parent=5 // pred_check_branch
        %276 = sbr.rel (%p273) target = $region32
      $region31: #{tpu_custom_call.1} parent=5 // pred_region
        %s277 = ssub.s32 %s22, 1
        %s278 = sand.u32 %s56, 1
        %s279 = scalar_lea.sflag [#allocation3], %s278
        %s280 = sand.u32 %s56, 1
        %s281 = smul.addr %s280, 8
        %s282 = scalar_lea.vmem [#allocation2], %s281
        // Predicated region
        $region33: #{tpu_custom_call.1} parent=31 // pred_check
          %p283 = pneg %p69
        $region34: #{tpu_custom_call.1} parent=31 // pred_check_branch
          %285 = sbr.rel (%p283) target = $region36
        $region35: #{tpu_custom_call.1} parent=31 // pred_region
          %286 = dma.done %s279, 128
        $region36: #{tpu_custom_call.1} parent=31 // pred_fallthru
          _
        // Predicated region
        $region37: #{tpu_custom_call.1} parent=31 // pred_check
          %p287 = pneg %p95
        $region38: #{tpu_custom_call.1} parent=31 // pred_check_branch
          %289 = sbr.rel (%p287) target = $region40
        $region39: #{tpu_custom_call.1} parent=31 // pred_region
          %290 = dma.done [#allocation6], 512
        $region40: #{tpu_custom_call.1} parent=31 // pred_fallthru
          _
        %s291 = sand.u32 %s56, 1
        %s292 = scalar_lea.sflag [#allocation3], %s291
        %s293 = sand.u32 %s56, 1
        %s294 = smul.addr %s293, 8
        %s295 = scalar_lea.vmem [#allocation2], %s294
        %p296 = pneg %p69
        %p297 = pneg %p66
        %p298 = pneg %p95
        %p299 = pneg %p92
        %p300 = scmp.lt.s32.totalorder %s32, 0
        %s301 = scalar_select %p300, %s32, 0
        %s302 = scalar_lea.vmem %s2, %s301
        %p303 = pneg %p121
        %p304 = pneg %p118
        %p305 = pneg %p151
        %p306 = pneg %p148
        %s307 = sand.u32 %s138, 1
        %s308 = scalar_lea.sflag [#allocation4], %s307
        %s309 = sand.u32 %s138, 1
        %s310 = smul.addr %s309, 32
        %s311 = scalar_lea.vmem [#allocation7], %s310
        %p312 = pneg %p181
        %p313 = pneg %p178
        %s314 = sand.u32 %s27, 1
        %s315 = scalar_lea.sflag [#allocation9], %s314
        %s316 = sand.u32 %s168, 1
        %s317 = smul.addr %s316, 32
        %s318 = scalar_lea.vmem [#allocation8], %s317
        %p319 = pneg %p211
        %p320 = pneg %p208
        %s321 = sand.u32 %s27, 1
        %s322 = scalar_lea.sflag [#allocation9], %s321
        %s323 = sand.u32 %s198, 1
        %s324 = smul.addr %s323, 32
        %s325 = scalar_lea.vmem [#allocation10], %s324
        %p326 = scmp.lt.s32.totalorder %s32, 0
        %s327 = scalar_select %p326, %s32, 0
        %s328 = scalar_lea.vmem %s2, %s327
        %s329 = smul.u32 4, %s32
        %s330 = smul.u32 4, %s32
        %s331 = smul.u32 4, %s32
        %v332 = vld [vmem:[%s282] sm:$0xff]
        %v333 = vld [vmem:[#allocation5] sm:$0xff]
        %v334 = vld [vmem:[#allocation5 + $0x8] sm:$0xff]
        %v335 = vld [vmem:[#allocation5 + $0x10] sm:$0xff]
        %v336 = vld [vmem:[#allocation5 + $0x18] sm:$0xff]
        %v337 = vld [vmem:[%s328] sm:$0x1]
        %v339 = vlaneseq
        %v340 = vshrl.u32 %v339, 7
        %v341 = vsub.s32 0, %v340
        %v342 = vrot.slane %v337, %v341
        %vm344 = vcmask 261120
        %v346 = vsel %vm344, %v332, 0
        %348 = vmatprep.subr.mxu0 0.0
        %349 = vmatpush1.msra.mxu0 %v333
        %350 = vmatprep.subr.mxu0 0.0
        %351 = vmatpush1.msra.mxu0 %v334
        %352 = vmatprep.subr.mxu0 0.0
        %353 = vmatpush1.msra.mxu0 %v335
        %354 = vmatprep.subr.mxu0 0.0
        %355 = vmatpush1.msra.mxu0 %v336
        %356 = vmatprep.subr.mxu0 0.0
        %357 = vmatpush1.msra.mxu0 0.0
        %358 = vmatprep.subr.mxu0 0.0
        %359 = vmatpush1.msra.mxu0 0.0
        %360 = vmatprep.subr.mxu0 0.0
        %361 = vmatpush1.msra.mxu0 0.0
        %362 = vmatprep.subr.mxu0 0.0
        %363 = vmatpush1.msra.mxu0 0.0
        %364 = vmatprep.subr.mxu0 0.0
        %365 = vmatpush1.msra.mxu0 0.0
        %366 = vmatprep.subr.mxu0 0.0
        %367 = vmatpush1.msra.mxu0 0.0
        %368 = vmatprep.subr.mxu0 0.0
        %369 = vmatpush1.msra.mxu0 0.0
        %370 = vmatprep.subr.mxu0 0.0
        %371 = vmatpush1.msra.mxu0 0.0
        %372 = vmatprep.subr.mxu0 0.0
        %373 = vmatpush1.msra.mxu0 0.0
        %374 = vmatprep.subr.mxu0 0.0
        %375 = vmatpush1.msra.mxu0 0.0
        %376 = vmatprep.subr.mxu0 0.0
        %377 = vmatpush1.msra.mxu0 0.0
        %378 = vmatprep.subr.mxu0 0.0
        %379 = vmatpush1.msra.mxu0 0.0
        %380 = vmatprep.subr.mxu0 0.0
        %381 = vmatpush1.msra.mxu0 0.0
        %382 = vmatprep.subr.mxu0 0.0
        %383 = vmatpush1.msra.mxu0 0.0
        %384 = vmatprep.subr.mxu0 0.0
        %385 = vmatpush1.msra.mxu0 0.0
        %386 = vmatprep.subr.mxu0 0.0
        %387 = vmatpush1.msra.mxu0 0.0
        %388 = vmatprep.subr.mxu0 0.0
        %389 = vmatpush1.msra.mxu0 0.0
        %390 = vmatprep.subr.mxu0 0.0
        %391 = vmatpush1.msra.mxu0 0.0
        %392 = vmatprep.subr.mxu0 0.0
        %393 = vmatpush1.msra.mxu0 0.0
        %394 = vmatprep.subr.mxu0 0.0
        %395 = vmatpush1.msra.mxu0 0.0
        %396 = vmatprep.subr.mxu0 0.0
        %397 = vmatpush1.msra.mxu0 0.0
        %398 = vmatprep.subr.mxu0 0.0
        %399 = vmatpush1.msra.mxu0 0.0
        %400 = vmatprep.subr.mxu0 0.0
        %401 = vmatpush1.msra.mxu0 0.0
        %402 = vmatprep.subr.mxu0 0.0
        %403 = vmatpush1.msra.mxu0 0.0
        %404 = vmatprep.subr.mxu0 0.0
        %405 = vmatpush1.msra.mxu0 0.0
        %406 = vmatprep.subr.mxu0 0.0
        %407 = vmatpush1.msra.mxu0 0.0
        %408 = vmatprep.subr.mxu0 0.0
        %409 = vmatpush1.msra.mxu0 0.0
        %410 = vmatprep.subr.mxu0 0.0
        %411 = vmatpush1.msra.mxu0 0.0
        %412 = vmatprep.mubr.f32.mxu0 0.0
        %413 = vmatmul.mubr.f32.gmra.mrb[0].mxu0 %v346
        %v414 = vpop.f32.mrb[0].mxu0
        %v415 = vadd.f32 %v342, %v414
        %v416 = vpop.f32.mrb[0].mxu0
        %417 = vdwg.mxu0
        %vm418 = vcmask 64512
        %419 = vst.msk [vmem:[%s311] sm:$0xff] %vm418, %v415
        %421 = vrot.lane.b32.xlu0 %v415, 120
        %v422 = vpop.permute.xlu0 %421
        %424 = vst.msk [vmem:[%s318] sm:$0xff] %vm418, %v422
        %425 = vrot.lane.b32.xlu0 %v415, 112
        %v426 = vpop.permute.xlu0 %425
        %428 = vst.msk [vmem:[%s325] sm:$0xff] %vm418, %v426
        %429 = vrot.lane.b32.xlu0 %v415, 104
        %v430 = vpop.permute.xlu0 %429
        %s432 = scalar_lea.vmem %s311, 8 [#allocation7]
        %433 = vst.msk [vmem:[%s432] sm:$0xff] %vm418, %v430
        %434 = vrot.lane.b32.xlu0 %v415, 96
        %v435 = vpop.permute.xlu0 %434
        %s437 = scalar_lea.vmem %s318, 8 [#allocation8]
        %438 = vst.msk [vmem:[%s437] sm:$0xff] %vm418, %v435
        %439 = vrot.lane.b32.xlu0 %v415, 88
        %v440 = vpop.permute.xlu0 %439
        %s442 = scalar_lea.vmem %s325, 8 [#allocation10]
        %443 = vst.msk [vmem:[%s442] sm:$0xff] %vm418, %v440
        %444 = vrot.lane.b32.xlu0 %v415, 80
        %v445 = vpop.permute.xlu0 %444
        %s447 = scalar_lea.vmem %s311, 16 [#allocation7]
        %448 = vst.msk [vmem:[%s447] sm:$0xff] %vm418, %v445
        %449 = vrot.lane.b32.xlu0 %v415, 72
        %v450 = vpop.permute.xlu0 %449
        %s452 = scalar_lea.vmem %s318, 16 [#allocation8]
        %453 = vst.msk [vmem:[%s452] sm:$0xff] %vm418, %v450
        %454 = vrot.lane.b32.xlu0 %v415, 64
        %v455 = vpop.permute.xlu0 %454
        %s457 = scalar_lea.vmem %s325, 16 [#allocation10]
        %458 = vst.msk [vmem:[%s457] sm:$0xff] %vm418, %v455
        %459 = vrot.lane.b32.xlu0 %v415, 56
        %v460 = vpop.permute.xlu0 %459
        %s462 = scalar_lea.vmem %s311, 24 [#allocation7]
        %463 = vst.msk [vmem:[%s462] sm:$0xff] %vm418, %v460
        %464 = vrot.lane.b32.xlu0 %v415, 48
        %v465 = vpop.permute.xlu0 %464
        %s467 = scalar_lea.vmem %s318, 24 [#allocation8]
        %468 = vst.msk [vmem:[%s467] sm:$0xff] %vm418, %v465
        %469 = vrot.lane.b32.xlu0 %v415, 40
        %v470 = vpop.permute.xlu0 %469
        %s472 = scalar_lea.vmem %s325, 24 [#allocation10]
        %473 = vst.msk [vmem:[%s472] sm:$0xff] %vm418, %v470
        %s474 = sand.u32 %s138, 1
        %s475 = scalar_lea.sflag [#allocation4], %s474
        %s476 = sand.u32 %s138, 1
        %s477 = smul.addr %s476, 32
        %s478 = scalar_lea.vmem [#allocation7], %s477
        %s479 = sand.u32 %s27, 1
        %s480 = scalar_lea.sflag [#allocation9], %s479
        %s481 = sand.u32 %s168, 1
        %s482 = smul.addr %s481, 32
        %s483 = scalar_lea.vmem [#allocation8], %s482
        %s484 = sand.u32 %s27, 1
        %s485 = scalar_lea.sflag [#allocation9], %s484
        %s486 = sand.u32 %s198, 1
        %s487 = smul.addr %s486, 32
        %s488 = scalar_lea.vmem [#allocation10], %s487
        // Predicated region
        $region41: #{tpu_custom_call.1} parent=31 // pred_check
          %p489 = pneg %p148
        $region42: #{tpu_custom_call.1} parent=31 // pred_check_branch
          %491 = sbr.rel (%p489) target = $region44
        $region43: #{tpu_custom_call.1} parent=31 // pred_region
          %s492 = smul.u32 4, %s32
          %s494 = ssub.s32 512, 512
          %495 = vsyncadd %s475, %s494
          %s496 = sadd.s32 %s34, %s492
          %s497 = smul.addr %s33, 4
          %s498 = sadd.s32 %s496, %s497
          %s499 = smul.addr %s498, 128
          %s500 = scalar_lea.hbm %s3, %s499
          %s501 = sshll.u32 %s478, 4
          %s502 = int_to_ptr.vmem [resolvable:$true] %s501
          %507 = dma.vmem_to_hbm [thread:$0]  %s502, 512, %s500, %s475, 128, 128, 8
        $region44: #{tpu_custom_call.1} parent=31 // pred_fallthru
          _
        // Predicated region
        $region45: #{tpu_custom_call.1} parent=31 // pred_check
          %p508 = pneg %p178
        $region46: #{tpu_custom_call.1} parent=31 // pred_check_branch
          %510 = sbr.rel (%p508) target = $region48
        $region47: #{tpu_custom_call.1} parent=31 // pred_region
          %s511 = smul.u32 4, %s32
          %s513 = ssub.s32 512, 512
          %514 = vsyncadd %s480, %s513
          %s515 = sadd.s32 %s34, %s511
          %s516 = smul.addr %s33, 4
          %s517 = sadd.s32 %s515, %s516
          %s518 = smul.addr %s517, 128
          %s519 = scalar_lea.hbm %s4, %s518
          %s520 = sshll.u32 %s483, 4
          %s521 = int_to_ptr.vmem [resolvable:$true] %s520
          %526 = dma.vmem_to_hbm [thread:$0]  %s521, 512, %s519, %s480, 128, 128, 8
        $region48: #{tpu_custom_call.1} parent=31 // pred_fallthru
          _
        // Predicated region
        $region49: #{tpu_custom_call.1} parent=31 // pred_check
          %p527 = pneg %p208
        $region50: #{tpu_custom_call.1} parent=31 // pred_check_branch
          %529 = sbr.rel (%p527) target = $region52
        $region51: #{tpu_custom_call.1} parent=31 // pred_region
          %s530 = smul.u32 4, %s32
          %s532 = ssub.s32 512, 512
          %533 = vsyncadd %s485, %s532
          %s534 = sadd.s32 %s34, %s530
          %s535 = smul.addr %s33, 4
          %s536 = sadd.s32 %s534, %s535
          %s537 = smul.addr %s536, 128
          %s538 = scalar_lea.hbm %s5, %s537
          %s539 = sshll.u32 %s488, 4
          %s540 = int_to_ptr.vmem [resolvable:$true] %s539
          %545 = dma.vmem_to_hbm [thread:$0]  %s540, 512, %s538, %s485, 128, 128, 8
        $region52: #{tpu_custom_call.1} parent=31 // pred_fallthru
          _
      $region32: #{tpu_custom_call.1} parent=5 // pred_fallthru
        _
      %p546 = scmp.le.s32.totalorder 2, %s22
      // Predicated region
      $region53: #{tpu_custom_call.1} parent=5 // pred_check
        %p547 = pneg %p546
      $region54: #{tpu_custom_call.1} parent=5 // pred_check_branch
        %549 = sbr.rel (%p547) target = $region56
      $region55: #{tpu_custom_call.1} parent=5 // pred_region
        %s550 = ssub.s32 %s22, 2
        // Predicated region
        $region57: #{tpu_custom_call.1} parent=55 // pred_check
          %p551 = pneg %p154
        $region58: #{tpu_custom_call.1} parent=55 // pred_check_branch
          %553 = sbr.rel (%p551) target = $region60
        $region59: #{tpu_custom_call.1} parent=55 // pred_region
          %s554 = sand.u32 %s139, 1
          %s555 = scalar_lea.sflag [#allocation4], %s554
          %s556 = sand.u32 %s139, 1
          %s557 = smul.addr %s556, 32
          %s558 = scalar_lea.vmem [#allocation7], %s557
          %559 = dma.done %s555, 512
        $region60: #{tpu_custom_call.1} parent=55 // pred_fallthru
          _
        // Predicated region
        $region61: #{tpu_custom_call.1} parent=55 // pred_check
          %p560 = pneg %p184
        $region62: #{tpu_custom_call.1} parent=55 // pred_check_branch
          %562 = sbr.rel (%p560) target = $region64
        $region63: #{tpu_custom_call.1} parent=55 // pred_region
          %s563 = sand.u32 %s28, 1
          %s564 = scalar_lea.sflag [#allocation9], %s563
          %s565 = sand.u32 %s169, 1
          %s566 = smul.addr %s565, 32
          %s567 = scalar_lea.vmem [#allocation8], %s566
          %568 = dma.done %s564, 512
        $region64: #{tpu_custom_call.1} parent=55 // pred_fallthru
          _
        // Predicated region
        $region65: #{tpu_custom_call.1} parent=55 // pred_check
          %p569 = pneg %p214
        $region66: #{tpu_custom_call.1} parent=55 // pred_check_branch
          %571 = sbr.rel (%p569) target = $region68
        $region67: #{tpu_custom_call.1} parent=55 // pred_region
          %s572 = sand.u32 %s28, 1
          %s573 = scalar_lea.sflag [#allocation9], %s572
          %s574 = sand.u32 %s199, 1
          %s575 = smul.addr %s574, 32
          %s576 = scalar_lea.vmem [#allocation10], %s575
          %577 = dma.done %s573, 512
        $region68: #{tpu_custom_call.1} parent=55 // pred_fallthru
          _
      $region56: #{tpu_custom_call.1} parent=5 // pred_fallthru
        _
    $region6: #{tpu_custom_call.1} parent=1 // loop_footer
      %s26 = sadd.s32 1, %s22
    $region7: #{tpu_custom_call.1} parent=1 // loop_footer_branch
      %21 = sbr.rel target = $region3
    $region8: #{tpu_custom_call.1} parent=1 // loop_exit
      _
    %578 = vsyncpa [#allocation3], 1
    %s579 = scalar_lea.sflag [#allocation3], 1
    %580 = vsyncpa %s579, 1
    %581 = vsyncpa [#allocation6], 1
    %582 = vsyncpa [#allocation4], 1
    %s583 = scalar_lea.sflag [#allocation4], 1
    %584 = vsyncpa %s583, 1
    %585 = vsyncpa [#allocation9], 1
    %s586 = scalar_lea.sflag [#allocation9], 1
    %587 = vsyncpa %s586, 1

</llo_original>
